<compile_context>
chip_gen: v7x
topology: tpu7x:2x2x1
jax: 0.10.0
libtpu: 0.0.40
codegen_flags: <defaults>
</compile_context>

<pallas_src>
import jax
import jax.numpy as jnp
from jax.experimental import pallas as pl
from jax.experimental.pallas import tpu as pltpu


def _round_up(x, m):
    return ((x + m - 1) // m) * m


def _nw_kernel(w_ref, q_ref, k_ref, v_ref, o_ref):
    # w_ref: (1,) f32 scalar parameter in SMEM
    # q_ref: (TILE_N, 1); k_ref / v_ref: (TILE_N, M); o_ref: (TILE_N, 1) VMEM tiles
    w = w_ref[0]
    scale = (-0.5) * w * w                      # fold *w, square, negate, /2

    q = q_ref[...].astype(jnp.float32)          # broadcasts over the lane dim
    k = k_ref[...].astype(jnp.float32)
    v = v_ref[...].astype(jnp.float32)

    diff = q - k
    scores = diff * diff * scale                # <= 0 everywhere (valid rows)

    # numerically-stable softmax without materializing the attention matrix;
    # garbage rows of a partial boundary block stay row-local and their stores
    # are masked by Pallas, so they cannot pollute valid rows.
    row_max = jnp.max(scores, axis=1, keepdims=True)
    e = jnp.exp(scores - row_max)
    num = jnp.sum(e * v, axis=1, keepdims=True)     # (TILE_N, 1)
    den = jnp.sum(e, axis=1, keepdims=True)         # (TILE_N, 1)
    o_ref[...] = (num * pl.reciprocal(den, approx=False)).astype(o_ref.dtype)


def nw_kernel_regression(w, queries, keys, values, *, max_tile_n=4096):
    """w: (1,) param; queries: (N,); keys: (N, M); values: (N, M) -> (N,) f32."""
    n, m = keys.shape
    assert values.shape == (n, m) and queries.shape == (n,)

    k_bytes = jnp.dtype(keys.dtype).itemsize
    v_bytes = jnp.dtype(values.dtype).itemsize
    # sublane granularity of the row tile (packed dtypes need taller tiles)
    sublane = {4: 8, 2: 16, 1: 32}[min(k_bytes, v_bytes, 4)]

    # ---- generation-aware VMEM budgeting ------------------------------------
    try:
        vmem_cap = int(pltpu.get_tpu_info().vmem_capacity_bytes)
    except Exception:  # stay portable if the query is unavailable
        vmem_cap = 64 << 20
    stream_budget = min(int(vmem_cap * 0.6), 100 << 20)

    m_lanes = _round_up(m, 128)                       # VMEM lane footprint of K/V rows
    per_row_vmem = (2 * m_lanes * (k_bytes + v_bytes)  # K,V double-buffered blocks
                    + 3 * m_lanes * 4                  # live f32 temporaries
                    + 2 * 2 * 128 * 4)                 # q,out blocks (lane-padded)

    tile_n = max(stream_budget // per_row_vmem, sublane)
    tile_n = min(tile_n, max(max_tile_n, sublane))
    if tile_n >= n:
        tile_n = max(n, 1)
    # keep the "parallel" row axis at >= 2 grid steps so both v7x TCs get work
    half = -(-n // 2)
    if n >= 2 * sublane and tile_n > half:
        tile_n = half
    tile_n = _round_up(tile_n, sublane)

    grid = (pl.cdiv(n, tile_n),)                      # partial last block is masked

    # raise scoped-VMEM limit just enough for the chosen tile, capped per chip
    needed = tile_n * per_row_vmem + (8 << 20)
    vmem_limit = min(max(32 << 20, needed), (vmem_cap * 3) // 4)

    f32 = jnp.float32
    q2d = queries.reshape(n, 1)                       # no padding, no dtype copy
    w1 = w.reshape(1).astype(f32)

    out = pl.pallas_call(
        _nw_kernel,
        out_shape=jax.ShapeDtypeStruct((n, 1), f32),
        grid=grid,
        in_specs=[
            pl.BlockSpec(memory_space=pltpu.SMEM),         # scalar parameter w
            pl.BlockSpec((tile_n, 1), lambda i: (i, 0)),   # queries
            pl.BlockSpec((tile_n, m), lambda i: (i, 0)),   # keys  (full last dim)
            pl.BlockSpec((tile_n, m), lambda i: (i, 0)),   # values(full last dim)
        ],
        out_specs=pl.BlockSpec((tile_n, 1), lambda i: (i, 0)),
        compiler_params=pltpu.CompilerParams(
            dimension_semantics=("parallel",),
            vmem_limit_bytes=int(vmem_limit),
        ),
    )(w1, q2d, keys, values)

    return out[:, 0]


def _reference(w, queries, keys, values):
    # pure-JAX reference mirroring the PyTorch forward
    n, m = keys.shape
    q = jnp.repeat(queries, m).reshape(-1, m)
    scores = -((q - keys) * w[0]) ** 2 / 2.0
    attn = jax.nn.softmax(scores, axis=1)
    return jnp.einsum("nm,nm->n", attn, values)


if __name__ == "__main__":
    key = jax.random.PRNGKey(0)
    kw, kq, kk, kv = jax.random.split(key, 4)

    # small shapes consistent with the module; N and M non-multiples of (8, 128)
    # exercise the partial boundary block and the full-M (unpadded) lane layout.
    N, M = 24, 50

    # torch.rand((1,)) equivalent: uniform [0, 1)
    w = jax.random.uniform(kw, (1,), dtype=jnp.float32)
    queries = jax.random.uniform(kq, (N,), dtype=jnp.float32) * 5.0
    keys = jax.random.uniform(kk, (N, M), dtype=jnp.float32) * 5.0
    values = jax.random.normal(kv, (N, M), dtype=jnp.float32)

    ref = _reference(w, queries, keys, values)

    # default tiling: 2-step parallel grid with a partial boundary block
    out = jax.block_until_ready(nw_kernel_regression(w, queries, keys, values))
    # forced small row tile: 3-step grid, exercises the pipelined path
    out_grid = jax.block_until_ready(
        nw_kernel_regression(w, queries, keys, values, max_tile_n=8))

    assert out.shape == (N,)
    assert jnp.allclose(out, ref, atol=1e-5, rtol=1e-5), (out, ref)
    assert jnp.allclose(out_grid, ref, atol=1e-5, rtol=1e-5), (out_grid, ref)

    print("KERNEL_OK")
</pallas_src>

<mosaic_0001>
module attributes {stable_mosaic.version = 11 : i64} {
  func.func @_nw_kernel(%arg0: i32, %arg1: memref<1xf32, #tpu.memory_space<smem>>, %arg2: memref<16x1xf32, #tpu.memory_space<vmem>>, %arg3: memref<16x50xf32, #tpu.memory_space<vmem>>, %arg4: memref<16x50xf32, #tpu.memory_space<vmem>>, %arg5: memref<16x1xf32, #tpu.memory_space<vmem>>) attributes {dimension_semantics = [#tpu.dimension_semantics<parallel>], iteration_bounds = array<i64: 2>, scalar_prefetch = 0 : i64, scratch_operands = 0 : i64, tpu.core_type = #tpu.core_type<tc>, window_params = [{transform_indices = @transform_0, window_bounds = array<i64: 1>}, {transform_indices = @transform_1, window_bounds = array<i64: 16, 1>}, {transform_indices = @transform_2, window_bounds = array<i64: 16, 50>}, {transform_indices = @transform_3, window_bounds = array<i64: 16, 50>}, {transform_indices = @transform_4, window_bounds = array<i64: 16, 1>}]} {
    %c0 = arith.constant 0 : index
    %0 = memref.load %arg1[%c0] : memref<1xf32, #tpu.memory_space<smem>>
    %cst = arith.constant -5.000000e-01 : f32
    %1 = arith.mulf %cst, %0 : f32
    %2 = arith.mulf %1, %0 : f32
    %c0_0 = arith.constant 0 : index
    %c0_1 = arith.constant 0 : index
    %3 = vector.load %arg2[%c0_0, %c0_1] : memref<16x1xf32, #tpu.memory_space<vmem>>, vector<16x1xf32>
    %c0_2 = arith.constant 0 : index
    %c0_3 = arith.constant 0 : index
    %4 = vector.load %arg3[%c0_2, %c0_3] : memref<16x50xf32, #tpu.memory_space<vmem>>, vector<16x50xf32>
    %c0_4 = arith.constant 0 : index
    %c0_5 = arith.constant 0 : index
    %5 = vector.load %arg4[%c0_4, %c0_5] : memref<16x50xf32, #tpu.memory_space<vmem>>, vector<16x50xf32>
    %6 = vector.broadcast %3 : vector<16x1xf32> to vector<16x50xf32>
    %7 = arith.subf %6, %4 : vector<16x50xf32>
    %8 = arith.mulf %7, %7 : vector<16x50xf32>
    %9 = vector.broadcast %2 : f32 to vector<16x50xf32>
    %10 = arith.mulf %8, %9 : vector<16x50xf32>
    %cst_6 = arith.constant dense<0xFF800000> : vector<16xf32>
    %11 = vector.multi_reduction <maximumf>, %10, %cst_6 [1] : vector<16x50xf32> to vector<16xf32>
    %12 = vector.shape_cast %11 : vector<16xf32> to vector<16x1xf32>
    %13 = vector.broadcast %12 : vector<16x1xf32> to vector<16x50xf32>
    %14 = arith.subf %10, %13 : vector<16x50xf32>
    %15 = math.exp %14 : vector<16x50xf32>
    %16 = arith.mulf %15, %5 : vector<16x50xf32>
    %cst_7 = arith.constant dense<0.000000e+00> : vector<16xf32>
    %17 = vector.multi_reduction <add>, %16, %cst_7 [1] : vector<16x50xf32> to vector<16xf32>
    %18 = vector.shape_cast %17 : vector<16xf32> to vector<16x1xf32>
    %cst_8 = arith.constant dense<0.000000e+00> : vector<16xf32>
    %19 = vector.multi_reduction <add>, %15, %cst_8 [1] : vector<16x50xf32> to vector<16xf32>
    %20 = vector.shape_cast %19 : vector<16xf32> to vector<16x1xf32>
    %21 = tpu.reciprocal %20 : vector<16x1xf32> -> vector<16x1xf32>
    %22 = arith.mulf %18, %21 : vector<16x1xf32>
    %c0_9 = arith.constant 0 : index
    %c0_10 = arith.constant 0 : index
    %23 = vector.load %arg5[%c0_9, %c0_10] : memref<16x1xf32, #tpu.memory_space<vmem>>, vector<16x1xf32>
    tpu.vector_store %arg5[%c0_9, %c0_10], %22 {strides = array<i32>} : memref<16x1xf32, #tpu.memory_space<vmem>>, vector<16x1xf32>,
    return
  }
  func.func @transform_0(%arg0: i32) -> i32 {
    %c0_i32 = arith.constant 0 : i32
    %c0_i32_0 = arith.constant 0 : i32
    return %c0_i32 : i32
  }
  func.func @transform_1(%arg0: i32) -> (i32, i32) {
    %c0_i32 = arith.constant 0 : i32
    %c0_i32_0 = arith.constant 0 : i32
    return %arg0, %c0_i32 : i32, i32
  }
  func.func @transform_2(%arg0: i32) -> (i32, i32) {
    %c0_i32 = arith.constant 0 : i32
    %c0_i32_0 = arith.constant 0 : i32
    return %arg0, %c0_i32 : i32, i32
  }
  func.func @transform_3(%arg0: i32) -> (i32, i32) {
    %c0_i32 = arith.constant 0 : i32
    %c0_i32_0 = arith.constant 0 : i32
    return %arg0, %c0_i32 : i32, i32
  }
  func.func @transform_4(%arg0: i32) -> (i32, i32) {
    %c0_i32 = arith.constant 0 : i32
    %c0_i32_0 = arith.constant 0 : i32
    return %arg0, %c0_i32 : i32, i32
  }
}

</mosaic_0001>

<llo_original>
// kernel: tpu_custom_call.1
$region0: #{tpu_custom_call.1}
  #allocation0 [shape = 'u32[]', space=smem, size = 0x4, offset = 0x4, fixed_abs, tag = 'smem constant byte address 0x4 - core index']
  #allocation1 [shape = 'u32[144,128]{1,0:T(1,128)}', space=vmem, size = 0x12000, scoped, tag = 'internal scratch']
  #allocation2 [shape = 'f32[1]{0:T(128)S(6)}', space=smem, size = 0x200, scoped, tag = 'scoped memory for tpu_custom_call.1']
  %s0 = inlined_call_operand.<no memory space> [shape: f32[1], index: 0, kind: input, shape index: {}]
  %s1 = inlined_call_operand.vmem [shape: f32[24,1], index: 1, kind: input, shape index: {}]
  %s2 = inlined_call_operand.vmem [shape: f32[24,50], index: 2, kind: input, shape index: {}]
  %s3 = inlined_call_operand.hbm [shape: f32[24,50], index: 3, kind: input, shape index: {}]
  %s4 = inlined_call_operand.vmem [shape: f32[24,1], index: 4, kind: output, shape index: {}]
  %s5 = sld [smem:[#allocation0]]
  $region101: #{tpu_custom_call.1} parent=0
    _
  %s7 = ssub.s32 1, %s5
  %s8 = scalar_select 0, %s7, %s5
  %9 = sst [smem:[#allocation2]] %s0
  $region1: #{tpu_custom_call.1} parent=0
    #allocation3 [shape = 'u8[16384]{0}', space=vmem, size = 0x4000, scoped, tag = 'input window, operand 3']
    #allocation4 [shape = 's32[2]{0}', space=sflag, size = 0x8, scoped, tag = 'scoped memory for tpu_custom_call.1']
    #allocation5 [shape = 'u8[16384]{0}', space=vmem, size = 0x4000, scoped, tag = 'output window, operand 0']
    %10 = vsyncpa [#allocation4], 0
    %s11 = scalar_lea.sflag [#allocation4], 1
    %12 = vsyncpa %s11, 0
    loop: start=0, step=1, limit=4
    $region2: #{tpu_custom_call.1} parent=1 // loop_pre_header
      _
    $region3: #{tpu_custom_call.1} parent=1 // loop_header
      %s14 = sphi 0, %s18
      %p15 = scmp.ge.s32.totalorder %s14, 4
      %s22 = sphi 0, %s22
      %s24 = sphi 0, %s22
      %s25 = sphi 0, %s24
      %s39 = sphi 0, %s25
      %s45 = sphi 0, %s47
      %s48 = sphi 0, %s45
      %s49 = sphi 0, %s48
      %s65 = sphi 0, %s49
      %s71 = sphi 0, %s73
      %s74 = sphi 0, %s71
      %s75 = sphi 0, %s74
      %s91 = sphi 0, %s75
      %s97 = sphi 0, %s99
      %s100 = sphi 0, %s97
      %s101 = sphi 0, %s100
      %s117 = sphi 0, %s101
      %s123 = sphi 0, %s125
      %s126 = sphi 0, %s123
      %s127 = sphi 0, %s126
      %s143 = sphi 0, %s127
    $region4: #{tpu_custom_call.1} parent=1 // loop_header_branch
      %17 = sbr.rel (%p15) target = $region8
    $region5: #{tpu_custom_call.1} parent=1 // loop_body
      %s19 = ssub.s32 %s14, 1
      %s20 = ssub.s32 %s14, 2
      %s21 = sadd.s32 %s14, 1
      %s23 = sadd.s32 %s22, 1
      %p26 = scmp.eq.s32.totalorder %s14, 1
      %p27 = scmp.ne.s32.totalorder %s22, %s24
      %p28 = scmp.eq.s32.totalorder %s14, 0
      %p29 = por %p27, %p28
      %p30 = scmp.ne.s32.totalorder %s22, %s24
      %p31 = scmp.eq.s32.totalorder %s19, 1
      %p32 = por %p30, %p31
      %p33 = scmp.ne.s32.totalorder %s24, %s25
      %p34 = scmp.eq.s32.totalorder %s19, 0
      %p35 = por %p33, %p34
      %p36 = scmp.ne.s32.totalorder %s24, %s25
      %p37 = scmp.eq.s32.totalorder %s20, 1
      %p38 = por %p36, %p37
      %p40 = scmp.ne.s32.totalorder %s25, %s39
      %p41 = scmp.eq.s32.totalorder %s20, 0
      %p42 = por %p40, %p41
      %s43 = ssub.s32 %s14, %s21
      %p44 = scmp.eq.s32.totalorder %s43, 0
      %s46 = sadd.s32 %s45, 1
      %s47 = scalar_select %p44, %s45, %s46
      %p50 = pneg %p44
      %p51 = scmp.eq.s32.totalorder %s14, 1
      %p52 = por %p50, %p51
      %p53 = scmp.ne.s32.totalorder %s45, %s48
      %p54 = scmp.eq.s32.totalorder %s14, 0
      %p55 = por %p53, %p54
      %p56 = scmp.ne.s32.totalorder %s45, %s48
      %p57 = scmp.eq.s32.totalorder %s19, 1
      %p58 = por %p56, %p57
      %p59 = scmp.ne.s32.totalorder %s48, %s49
      %p60 = scmp.eq.s32.totalorder %s19, 0
      %p61 = por %p59, %p60
      %p62 = scmp.ne.s32.totalorder %s48, %s49
      %p63 = scmp.eq.s32.totalorder %s20, 1
      %p64 = por %p62, %p63
      %p66 = scmp.ne.s32.totalorder %s49, %s65
      %p67 = scmp.eq.s32.totalorder %s20, 0
      %p68 = por %p66, %p67
      %s69 = ssub.s32 %s14, %s21
      %p70 = scmp.eq.s32.totalorder %s69, 0
      %s72 = sadd.s32 %s71, 1
      %s73 = scalar_select %p70, %s71, %s72
      %p76 = pneg %p70
      %p77 = scmp.eq.s32.totalorder %s14, 1
      %p78 = por %p76, %p77
      %p79 = scmp.ne.s32.totalorder %s71, %s74
      %p80 = scmp.eq.s32.totalorder %s14, 0
      %p81 = por %p79, %p80
      %p82 = scmp.ne.s32.totalorder %s71, %s74
      %p83 = scmp.eq.s32.totalorder %s19, 1
      %p84 = por %p82, %p83
      %p85 = scmp.ne.s32.totalorder %s74, %s75
      %p86 = scmp.eq.s32.totalorder %s19, 0
      %p87 = por %p85, %p86
      %p88 = scmp.ne.s32.totalorder %s74, %s75
      %p89 = scmp.eq.s32.totalorder %s20, 1
      %p90 = por %p88, %p89
      %p92 = scmp.ne.s32.totalorder %s75, %s91
      %p93 = scmp.eq.s32.totalorder %s20, 0
      %p94 = por %p92, %p93
      %s95 = ssub.s32 %s14, %s21
      %p96 = scmp.eq.s32.totalorder %s95, 0
      %s98 = sadd.s32 %s97, 1
      %s99 = scalar_select %p96, %s97, %s98
      %p102 = pneg %p96
      %p103 = scmp.eq.s32.totalorder %s14, 1
      %p104 = por %p102, %p103
      %p105 = scmp.ne.s32.totalorder %s97, %s100
      %p106 = scmp.eq.s32.totalorder %s14, 0
      %p107 = por %p105, %p106
      %p108 = scmp.ne.s32.totalorder %s97, %s100
      %p109 = scmp.eq.s32.totalorder %s19, 1
      %p110 = por %p108, %p109
      %p111 = scmp.ne.s32.totalorder %s100, %s101
      %p112 = scmp.eq.s32.totalorder %s19, 0
      %p113 = por %p111, %p112
      %p114 = scmp.ne.s32.totalorder %s100, %s101
      %p115 = scmp.eq.s32.totalorder %s20, 1
      %p116 = por %p114, %p115
      %p118 = scmp.ne.s32.totalorder %s101, %s117
      %p119 = scmp.eq.s32.totalorder %s20, 0
      %p120 = por %p118, %p119
      %s121 = ssub.s32 %s14, %s21
      %p122 = scmp.eq.s32.totalorder %s121, 0
      %s124 = sadd.s32 %s123, 1
      %s125 = scalar_select %p122, %s123, %s124
      %p128 = pneg %p122
      %p129 = scmp.eq.s32.totalorder %s14, 1
      %p130 = por %p128, %p129
      %p131 = scmp.ne.s32.totalorder %s123, %s126
      %p132 = scmp.eq.s32.totalorder %s14, 0
      %p133 = por %p131, %p132
      %p134 = scmp.ne.s32.totalorder %s123, %s126
      %p135 = scmp.eq.s32.totalorder %s19, 1
      %p136 = por %p134, %p135
      %p137 = scmp.ne.s32.totalorder %s126, %s127
      %p138 = scmp.eq.s32.totalorder %s19, 0
      %p139 = por %p137, %p138
      %p140 = scmp.ne.s32.totalorder %s126, %s127
      %p141 = scmp.eq.s32.totalorder %s20, 1
      %p142 = por %p140, %p141
      %p144 = scmp.ne.s32.totalorder %s127, %s143
      %p145 = scmp.eq.s32.totalorder %s20, 0
      %p146 = por %p144, %p145
      %p147 = scmp.le.s32.totalorder 1, %s14
      %p148 = scmp.lt.s32.totalorder %s14, 3
      %p149 = pnand %p147, %p148
      %p150 = pneg %p149
      // Predicated region
      $region9: #{tpu_custom_call.1} parent=5 // pred_check
        _
      $region10: #{tpu_custom_call.1} parent=5 // pred_check_branch
        %152 = sbr.rel (%p149) target = $region12
      $region11: #{tpu_custom_call.1} parent=5 // pred_region
        %s153 = ssub.s32 %s14, 1
        // Predicated region
        $region13: #{tpu_custom_call.1} parent=11 // pred_check
          %p154 = pneg %p35
        $region14: #{tpu_custom_call.1} parent=11 // pred_check_branch
          %156 = sbr.rel (%p154) target = $region16
        $region15: #{tpu_custom_call.1} parent=11 // pred_region
          _
        $region16: #{tpu_custom_call.1} parent=11 // pred_fallthru
          _
      $region12: #{tpu_custom_call.1} parent=5 // pred_fallthru
        _
      %p157 = scmp.lt.s32.totalorder %s14, 2
      // Predicated region
      $region17: #{tpu_custom_call.1} parent=5 // pred_check
        %p158 = pneg %p157
      $region18: #{tpu_custom_call.1} parent=5 // pred_check_branch
        %160 = sbr.rel (%p158) target = $region20
      $region19: #{tpu_custom_call.1} parent=5 // pred_region
        // Predicated region
        $region21: #{tpu_custom_call.1} parent=19 // pred_check
          %p161 = pneg %p55
        $region22: #{tpu_custom_call.1} parent=19 // pred_check_branch
          %163 = sbr.rel (%p161) target = $region24
        $region23: #{tpu_custom_call.1} parent=19 // pred_region
          %s164 = smul.u32 2, %s14
          %s165 = ssub.s32 3, %s164
          %p166 = scmp.lt.s32.totalorder %s165, 2
          %s167 = scalar_select %p166, %s165, 2
          %s168 = smul.u32 128, %s167
          %p169 = scmp.lt.s32.totalorder %s164, 2
          %s170 = scalar_select %p169, %s164, 2
          %s171 = smul.addr %s170, 8
          %s172 = scalar_lea.vmem %s1, %s171
          %s173 = smul.u32 2, %s14
          %s174 = ssub.s32 3, %s173
          %p175 = scmp.lt.s32.totalorder %s174, 2
          %s176 = scalar_select %p175, %s174, 2
          %s177 = smul.u32 128, %s176
        $region24: #{tpu_custom_call.1} parent=19 // pred_fallthru
          _
        // Predicated region
        $region25: #{tpu_custom_call.1} parent=19 // pred_check
          %p178 = pneg %p81
        $region26: #{tpu_custom_call.1} parent=19 // pred_check_branch
          %180 = sbr.rel (%p178) target = $region28
        $region27: #{tpu_custom_call.1} parent=19 // pred_region
          %s181 = smul.u32 2, %s14
          %s182 = ssub.s32 3, %s181
          %p183 = scmp.lt.s32.totalorder %s182, 2
          %s184 = scalar_select %p183, %s182, 2
          %s185 = smul.u32 128, %s184
          %p186 = scmp.lt.s32.totalorder %s181, 2
          %s187 = scalar_select %p186, %s181, 2
          %s188 = smul.addr %s187, 8
          %s189 = scalar_lea.vmem %s2, %s188
          %s190 = smul.u32 2, %s14
          %s191 = ssub.s32 3, %s190
          %p192 = scmp.lt.s32.totalorder %s191, 2
          %s193 = scalar_select %p192, %s191, 2
          %s194 = smul.u32 128, %s193
        $region28: #{tpu_custom_call.1} parent=19 // pred_fallthru
          _
        // Predicated region
        $region29: #{tpu_custom_call.1} parent=19 // pred_check
          %p195 = pneg %p107
        $region30: #{tpu_custom_call.1} parent=19 // pred_check_branch
          %197 = sbr.rel (%p195) target = $region32
        $region31: #{tpu_custom_call.1} parent=19 // pred_region
          %s198 = sand.u32 %s97, 1
          %s199 = scalar_lea.sflag [#allocation4], %s198
          %s200 = sand.u32 %s97, 1
          %s201 = smul.addr %s200, 16
          %s202 = scalar_lea.vmem [#allocation3], %s201
          %s203 = smul.u32 2, %s14
          %s204 = ssub.s32 3, %s203
          %p205 = scmp.lt.s32.totalorder %s204, 2
          %s206 = scalar_select %p205, %s204, 2
          %s207 = smul.u32 128, %s206
          %s209 = ssub.s32 256, %s207
          %210 = vsyncadd %s199, %s209
          %p211 = scmp.ne.s32.totalorder 0, %s207
          %s212 = smul.addr %s203, 128
          %s213 = scalar_lea.hbm %s3, %s212
          %s214 = smul.u32 8, %s206
          %s215 = sshll.u32 %s202, 4
          %s216 = int_to_ptr.vmem [resolvable:$true] %s215
          %s217 = sshll.u32 %s214, 4
          %221 = dma.hbm_to_vmem [thread:$0]  (%p211), %s213, %s217, %s216, %s199, 128, 128, 8
        $region32: #{tpu_custom_call.1} parent=19 // pred_fallthru
          _
      $region20: #{tpu_custom_call.1} parent=5 // pred_fallthru
        _
      %p222 = scmp.le.s32.totalorder 1, %s14
      %p223 = scmp.lt.s32.totalorder %s14, 3
      %p224 = pnand %p222, %p223
      %p225 = pneg %p224
      // Predicated region
      $region33: #{tpu_custom_call.1} parent=5 // pred_check
        _
      $region34: #{tpu_custom_call.1} parent=5 // pred_check_branch
        %227 = sbr.rel (%p224) target = $region36
      $region35: #{tpu_custom_call.1} parent=5 // pred_region
        %s228 = ssub.s32 %s14, 1
        %s229 = sand.u32 %s100, 1
        %s230 = scalar_lea.sflag [#allocation4], %s229
        %s231 = sand.u32 %s100, 1
        %s232 = smul.addr %s231, 16
        %s233 = scalar_lea.vmem [#allocation3], %s232
        // Predicated region
        $region37: #{tpu_custom_call.1} parent=35 // pred_check
          %p234 = pneg %p113
        $region38: #{tpu_custom_call.1} parent=35 // pred_check_branch
          %236 = sbr.rel (%p234) target = $region40
        $region39: #{tpu_custom_call.1} parent=35 // pred_region
          %237 = dma.done %s230, 256
        $region40: #{tpu_custom_call.1} parent=35 // pred_fallthru
          _
        %p238 = pneg %p35
        %p239 = pneg %p32
        %s240 = smul.u32 2, %s19
        %s241 = ssub.s32 3, %s240
        %p242 = scmp.lt.s32.totalorder %s241, 2
        %s243 = scalar_select %p242, %s241, 2
        %s244 = smul.u32 128, %s243
        %p245 = scmp.lt.s32.totalorder %s240, 2
        %s246 = scalar_select %p245, %s240, 2
        %s247 = smul.addr %s246, 8
        %s248 = scalar_lea.vmem %s1, %s247
        %p249 = pneg %p61
        %p250 = pneg %p58
        %s251 = smul.u32 2, %s19
        %s252 = ssub.s32 3, %s251
        %p253 = scmp.lt.s32.totalorder %s252, 2
        %s254 = scalar_select %p253, %s252, 2
        %s255 = smul.u32 128, %s254
        %p256 = scmp.lt.s32.totalorder %s251, 2
        %s257 = scalar_select %p256, %s251, 2
        %s258 = smul.addr %s257, 8
        %s259 = scalar_lea.vmem %s2, %s258
        %p260 = pneg %p87
        %p261 = pneg %p84
        %s262 = sand.u32 %s100, 1
        %s263 = scalar_lea.sflag [#allocation4], %s262
        %s264 = sand.u32 %s100, 1
        %s265 = smul.addr %s264, 16
        %s266 = scalar_lea.vmem [#allocation3], %s265
        %p267 = pneg %p113
        %p268 = pneg %p110
        %p269 = pneg %p139
        %p270 = pneg %p136
        %s271 = sand.u32 %s126, 1
        %s272 = sand.u32 %s126, 1
        %s273 = smul.addr %s272, 16
        %s274 = scalar_lea.vmem [#allocation5], %s273
        %s275 = smul.u32 2, %s19
        %s276 = ssub.s32 3, %s275
        %p277 = scmp.lt.s32.totalorder %s276, 2
        %s278 = scalar_select %p277, %s276, 2
        %s279 = smul.u32 128, %s278
        %p280 = scmp.lt.s32.totalorder %s275, 2
        %s281 = scalar_select %p280, %s275, 2
        %s282 = smul.addr %s281, 8
        %s283 = scalar_lea.vmem %s1, %s282
        %s284 = smul.u32 2, %s19
        %s285 = ssub.s32 3, %s284
        %p286 = scmp.lt.s32.totalorder %s285, 2
        %s287 = scalar_select %p286, %s285, 2
        %s288 = smul.u32 128, %s287
        %s289 = smul.u32 2, %s19
        %s290 = ssub.s32 3, %s289
        %p291 = scmp.lt.s32.totalorder %s290, 2
        %s292 = scalar_select %p291, %s290, 2
        %s293 = smul.u32 128, %s292
        %p294 = scmp.lt.s32.totalorder %s289, 2
        %s295 = scalar_select %p294, %s289, 2
        %s296 = smul.addr %s295, 8
        %s297 = scalar_lea.vmem %s2, %s296
        %s298 = smul.u32 2, %s19
        %s299 = ssub.s32 3, %s298
        %p300 = scmp.lt.s32.totalorder %s299, 2
        %s301 = scalar_select %p300, %s299, 2
        %s302 = smul.u32 128, %s301
        %s303 = smul.u32 2, %s19
        %s304 = ssub.s32 3, %s303
        %p305 = scmp.lt.s32.totalorder %s304, 2
        %s306 = scalar_select %p305, %s304, 2
        %s307 = smul.u32 128, %s306
        %s308 = smul.u32 2, %s19
        %s309 = ssub.s32 3, %s308
        %p310 = scmp.lt.s32.totalorder %s309, 2
        %s311 = scalar_select %p310, %s309, 2
        %s312 = smul.u32 128, %s311
        %s313 = sld [smem:[#allocation2]]
        %s314 = smul.f32 %s313, -0.5
        %s315 = smul.f32 %s314, %s313
        %v316 = vld [vmem:[%s283] sm:$0xff]
        %v317 = vld [vmem:[%s283 + $0x8] sm:$0xff]
        %v318 = vld [vmem:[%s297] sm:$0xff]
        %v319 = vld [vmem:[%s297 + $0x8] sm:$0xff]
        %v320 = vld [vmem:[%s233] sm:$0xff]
        %v321 = vld [vmem:[%s233 + $0x8] sm:$0xff]
        %323 = vset.pattern.permute.xlu0 0
        %324 = vperm.xlu0 %323, %v316
        %v325 = vpop.permute.xlu0 %324
        %328 = vset.pattern.permute.xlu0 0
        %329 = vperm.xlu0 %328, %v317
        %v330 = vpop.permute.xlu0 %329
        %v332 = vsub.f32 %v325, %v318
        %v333 = vsub.f32 %v330, %v319
        %v334 = vmul.f32 %v332, %v332
        %v335 = vmul.f32 %v333, %v333
        %v336 = vstv %s315
        %v337 = vmul.f32 %v334, %v336
        %v338 = vmul.f32 %v335, %v336
        %vm339 = vcmask 408576
        %v340 = vsel %vm339, %v337, -inf
        %341 = vmax.xlane.f32.xlu0 %v340
        %v342 = vpop.xlane.xlu0 %341
        %v343 = vsel %vm339, %v338, -inf
        %344 = vmax.xlane.f32.xlu0 %v343
        %v345 = vpop.xlane.xlu0 %344
        %v346 = vsub.f32 %v337, %v342
        %v347 = vsub.f32 %v338, %v345
        %v348 = vmul.f32 %v346, 1.442695
        %v349 = vpow.pop %v348
        %v350 = vmul.f32 %v347, 1.442695
        %v351 = vpow.pop %v350
        %v352 = vmul.f32 %v349, %v320
        %v353 = vmul.f32 %v351, %v321
        %v354 = vsel %vm339, %v352, 0.0
        %355 = vadd.xlane.f32.xlu0 %v354
        %v356 = vpop.xlane.xlu0 %355
        %v357 = vsel %vm339, %v353, 0.0
        %358 = vadd.xlane.f32.xlu0 %v357
        %v359 = vpop.xlane.xlu0 %358
        %v360 = vsel %vm339, %v349, 0.0
        %361 = vadd.xlane.f32.xlu0 %v360
        %v362 = vpop.xlane.xlu0 %361
        %v363 = vsel %vm339, %v351, 0.0
        %364 = vadd.xlane.f32.xlu0 %v363
        %v365 = vpop.xlane.xlu0 %364
        %v366 = vrcp.pop %v362
        %v367 = vrcp.pop %v365
        %v368 = vmul.f32 %v356, %v366
        %v369 = vmul.f32 %v359, %v367
        %vm370 = vcmask 7168
        %371 = vst.msk [vmem:[%s274] sm:$0xff] %vm370, %v368
        %372 = vst.msk [vmem:[%s274 + $0x8] sm:$0xff] %vm370, %v369
        %s373 = sand.u32 %s126, 1
        %s374 = sand.u32 %s126, 1
        %s375 = smul.addr %s374, 16
        %s376 = scalar_lea.vmem [#allocation5], %s375
        // Predicated region
        $region41: #{tpu_custom_call.1} parent=35 // pred_check
          %p377 = pneg %p136
        $region42: #{tpu_custom_call.1} parent=35 // pred_check_branch
          %379 = sbr.rel (%p377) target = $region44
        $region43: #{tpu_custom_call.1} parent=35 // pred_region
          %s380 = smul.u32 2, %s19
          %s381 = ssub.s32 3, %s380
          %p382 = scmp.lt.s32.totalorder %s381, 2
          %s383 = scalar_select %p382, %s381, 2
          %s384 = smul.u32 128, %s383
          %p385 = scmp.ne.s32.totalorder 0, %s384
          %s386 = smul.addr %s380, 8
          %s387 = scalar_lea.vmem %s4, %s386
          // Predicated region
          $region45: #{tpu_custom_call.1} parent=43 // pred_check
            %p388 = pneg %p385
          $region46: #{tpu_custom_call.1} parent=43 // pred_check_branch
            %390 = sbr.rel (%p388) target = $region48
          $region47: #{tpu_custom_call.1} parent=43 // pred_region
            // Predicated region
            $region49: #{tpu_custom_call.1} parent=47 // pred_check
              _
            $region50: #{tpu_custom_call.1} parent=47 // pred_check_branch
              %392 = sbr.rel (0) target = $region52
            $region51: #{tpu_custom_call.1} parent=47 // pred_region
              // Predicated region
              $region71: #{tpu_custom_call.1} parent=51 // pred_check
                _
              $region72: #{tpu_custom_call.1} parent=51 // pred_check_branch
                %443 = sbr.rel (0) target = $region74
              $region73: #{tpu_custom_call.1} parent=51 // pred_region
                %s444 = sshrl.u32 %s383, 1
                // While loop
                $region75: #{tpu_custom_call.1} parent=73 // loop_pre_header
                  _
                $region76: #{tpu_custom_call.1} parent=73 // loop_header
                  %s446 = sphi 0, %s448
                  %p447 = scmp.ge.s32.totalorder %s446, %s444
                  %s451 = sphi 0, %s460
                  %s452 = sphi %s376, %s463
                  %s453 = sphi %s387, %s464
                $region77: #{tpu_custom_call.1} parent=73 // loop_header_branch
                  %450 = sbr.rel (%p447) target = $region81
                $region78: #{tpu_custom_call.1} parent=73 // loop_body
                  %v454 = vld [vmem:[%s452] sm:$0xff]
                  %455 = vst [vmem:[%s453] sm:$0xff] %v454
                  %v456 = vld [vmem:[%s452 + $0x8] sm:$0xff]
                  %457 = vst [vmem:[%s453 + $0x8] sm:$0xff] %v456
                  %s458 = sadd.s32 1, %s451
                  %p459 = scmp.ge.s32.totalorder %s458, %s444
                  %s460 = scalar_select %p459, 0, %s458
                  %s461 = smul.u32 %s460, 16
                  %s462 = smul.u32 %s460, 16
                  %s463 = scalar_lea.vmem %s376, %s461 [#allocation5]
                  %s464 = scalar_lea.vmem %s387, %s462
                $region79: #{tpu_custom_call.1} parent=73 // loop_footer
                  %s448 = sadd.s32 %s446, 1
                $region80: #{tpu_custom_call.1} parent=73 // loop_footer_branch
                  %445 = sbr.rel target = $region76
                $region81: #{tpu_custom_call.1} parent=73 // loop_exit
                  _
                %s465 = sshrl.u32 %s383, 1
                %s466 = sand.u32 %s383, 1
                %s467 = smul.u32 %s465, 2
                %s468 = smul.u32 8, %s467
                %s469 = scalar_lea.vmem %s376, %s468 [#allocation5]
                %s470 = smul.u32 8, %s467
                %s471 = scalar_lea.vmem %s387, %s470
                // While loop
                $region82: #{tpu_custom_call.1} parent=73 // loop_pre_header
                  _
                $region83: #{tpu_custom_call.1} parent=73 // loop_header
                  %s473 = sphi 0, %s475
                  %p474 = scmp.ge.s32.totalorder %s473, %s466
                  %s478 = sphi 0, %s485
                  %s479 = sphi %s469, %s488
                  %s480 = sphi %s471, %s489
                $region84: #{tpu_custom_call.1} parent=73 // loop_header_branch
                  %477 = sbr.rel (%p474) target = $region88
                $region85: #{tpu_custom_call.1} parent=73 // loop_body
                  %v481 = vld [vmem:[%s479] sm:$0xff]
                  %482 = vst [vmem:[%s480] sm:$0xff] %v481
                  %s483 = sadd.s32 1, %s478
                  %p484 = scmp.ge.s32.totalorder %s483, %s466
                  %s485 = scalar_select %p484, 0, %s483
                  %s486 = smul.u32 %s485, 8
                  %s487 = smul.u32 %s485, 8
                  %s488 = scalar_lea.vmem %s469, %s486 [#allocation5]
                  %s489 = scalar_lea.vmem %s471, %s487
                $region86: #{tpu_custom_call.1} parent=73 // loop_footer
                  %s475 = sadd.s32 %s473, 1
                $region87: #{tpu_custom_call.1} parent=73 // loop_footer_branch
                  %472 = sbr.rel target = $region83
                $region88: #{tpu_custom_call.1} parent=73 // loop_exit
                  _
              $region74: #{tpu_custom_call.1} parent=51 // pred_fallthru
                _
              // Predicated region
              $region89: #{tpu_custom_call.1} parent=51 // pred_check
                _
              $region90: #{tpu_custom_call.1} parent=51 // pred_check_branch
                %491 = sbr.rel target = $region92
              $region91: #{tpu_custom_call.1} parent=51 // pred_region
                _
              $region92: #{tpu_custom_call.1} parent=51 // pred_fallthru
                _
            $region52: #{tpu_custom_call.1} parent=47 // pred_fallthru
              _
            // Predicated region
            $region53: #{tpu_custom_call.1} parent=47 // pred_check
              _
            $region54: #{tpu_custom_call.1} parent=47 // pred_check_branch
              %394 = sbr.rel target = $region56
            $region55: #{tpu_custom_call.1} parent=47 // pred_region
              %s396 = sshrl.u32 %s383, 1
              // While loop
              $region57: #{tpu_custom_call.1} parent=55 // loop_pre_header
                _
              $region58: #{tpu_custom_call.1} parent=55 // loop_header
                %s398 = sphi 0, %s400
                %p399 = scmp.ge.s32.totalorder %s398, %s396
                %s403 = sphi 0, %s412
                %s404 = sphi %s376, %s415
                %s405 = sphi %s387, %s416
              $region59: #{tpu_custom_call.1} parent=55 // loop_header_branch
                %402 = sbr.rel (%p399) target = $region63
              $region60: #{tpu_custom_call.1} parent=55 // loop_body
                %v406 = vld [vmem:[%s404] sm:$0xff]
                %407 = vst [vmem:[%s405] sm:$0xff] %v406
                %v408 = vld [vmem:[%s404 + $0x8] sm:$0xff]
                %409 = vst [vmem:[%s405 + $0x8] sm:$0xff] %v408
                %s410 = sadd.s32 1, %s403
                %p411 = scmp.ge.s32.totalorder %s410, %s396
                %s412 = scalar_select %p411, 0, %s410
                %s413 = smul.u32 %s412, 16
                %s414 = smul.u32 %s412, 16
                %s415 = scalar_lea.vmem %s376, %s413 [#allocation5]
                %s416 = scalar_lea.vmem %s387, %s414
              $region61: #{tpu_custom_call.1} parent=55 // loop_footer
                %s400 = sadd.s32 %s398, 1
              $region62: #{tpu_custom_call.1} parent=55 // loop_footer_branch
                %397 = sbr.rel target = $region58
              $region63: #{tpu_custom_call.1} parent=55 // loop_exit
                _
              %s417 = sshrl.u32 %s383, 1
              %s418 = sand.u32 %s383, 1
              %s419 = smul.u32 %s417, 2
              %s420 = smul.u32 8, %s419
              %s421 = scalar_lea.vmem %s376, %s420 [#allocation5]
              %s422 = smul.u32 8, %s419
              %s423 = scalar_lea.vmem %s387, %s422
              // While loop
              $region64: #{tpu_custom_call.1} parent=55 // loop_pre_header
                _
              $region65: #{tpu_custom_call.1} parent=55 // loop_header
                %s425 = sphi 0, %s427
                %p426 = scmp.ge.s32.totalorder %s425, %s418
                %s430 = sphi 0, %s437
                %s431 = sphi %s421, %s440
                %s432 = sphi %s423, %s441
              $region66: #{tpu_custom_call.1} parent=55 // loop_header_branch
                %429 = sbr.rel (%p426) target = $region70
              $region67: #{tpu_custom_call.1} parent=55 // loop_body
                %v433 = vld [vmem:[%s431] sm:$0xff]
                %434 = vst [vmem:[%s432] sm:$0xff] %v433
                %s435 = sadd.s32 1, %s430
                %p436 = scmp.ge.s32.totalorder %s435, %s418
                %s437 = scalar_select %p436, 0, %s435
                %s438 = smul.u32 %s437, 8
                %s439 = smul.u32 %s437, 8
                %s440 = scalar_lea.vmem %s421, %s438 [#allocation5]
                %s441 = scalar_lea.vmem %s423, %s439
              $region68: #{tpu_custom_call.1} parent=55 // loop_footer
                %s427 = sadd.s32 %s425, 1
              $region69: #{tpu_custom_call.1} parent=55 // loop_footer_branch
                %424 = sbr.rel target = $region65
              $region70: #{tpu_custom_call.1} parent=55 // loop_exit
                _
            $region56: #{tpu_custom_call.1} parent=47 // pred_fallthru
              _
          $region48: #{tpu_custom_call.1} parent=43 // pred_fallthru
            _
          %492 = vnop
        $region44: #{tpu_custom_call.1} parent=35 // pred_fallthru
          _
      $region36: #{tpu_custom_call.1} parent=5 // pred_fallthru
        _
      %p493 = scmp.le.s32.totalorder 2, %s14
      // Predicated region
      $region93: #{tpu_custom_call.1} parent=5 // pred_check
        %p494 = pneg %p493
      $region94: #{tpu_custom_call.1} parent=5 // pred_check_branch
        %496 = sbr.rel (%p494) target = $region96
      $region95: #{tpu_custom_call.1} parent=5 // pred_region
        %s497 = ssub.s32 %s14, 2
        // Predicated region
        $region97: #{tpu_custom_call.1} parent=95 // pred_check
          %p498 = pneg %p142
        $region98: #{tpu_custom_call.1} parent=95 // pred_check_branch
          %500 = sbr.rel (%p498) target = $region100
        $region99: #{tpu_custom_call.1} parent=95 // pred_region
          %s501 = sand.u32 %s127, 1
          %s502 = sand.u32 %s127, 1
          %s503 = smul.addr %s502, 16
          %s504 = scalar_lea.vmem [#allocation5], %s503
        $region100: #{tpu_custom_call.1} parent=95 // pred_fallthru
          _
      $region96: #{tpu_custom_call.1} parent=5 // pred_fallthru
        _
    $region6: #{tpu_custom_call.1} parent=1 // loop_footer
      %s18 = sadd.s32 1, %s14
    $region7: #{tpu_custom_call.1} parent=1 // loop_footer_branch
      %13 = sbr.rel target = $region3
    $region8: #{tpu_custom_call.1} parent=1 // loop_exit
      _
    %505 = vsyncpa [#allocation4], 1
    %s506 = scalar_lea.sflag [#allocation4], 1
    %507 = vsyncpa %s506, 1

</llo_original>
